<compile_context>
chip_gen: v6e
topology: v6e:2x2x1
jax: 0.10.0
libtpu: 0.0.40
codegen_flags: <defaults>
</compile_context>

<pallas_src>
import functools
import math

import jax
import jax.numpy as jnp
from jax.experimental import pallas as pl
from jax.experimental.pallas import tpu as pltpu


_LANE = 128
_SUBLANE = 8
# ~2 MiB f32 per block per array -> 6 live buffers (1 in + 2 out, double
# buffered) ~= 12 MiB, comfortably inside v7x's 32 MiB scoped VMEM default
# while being far above the ~512-wide tile needed to hit HBM roofline.
_MAX_BLOCK_ELEMS = 512 * 1024


# --------------------------------- kernels -----------------------------------
def _linear_kernel(t_ref, abar_t_ref, abar_tm1_ref, *, alpha_bar_min, t_max):
    t = t_ref[...]
    span = 1.0 - alpha_bar_min
    inv_t_max = 1.0 / t_max                       # fold division at trace time
    abar_t = alpha_bar_min + (1.0 - t * inv_t_max) * span
    abar_t_ref[...] = abar_t.astype(abar_t_ref.dtype)
    # abar_{t-1} = abar_t + span/t_max : single constant add on the value we
    # already computed (drops a sub + mul per element).
    abar_tm1_ref[...] = (abar_t + span * inv_t_max).astype(abar_tm1_ref.dtype)


def _cosine_kernel(t_ref, abar_t_ref, abar_tm1_ref, *, alpha_bar_min, t_max, s):
    t = t_ref[...]
    span = 1.0 - alpha_bar_min
    # pi/2 * (t/t_max + s)/(1+s)  ==  t * scale + offset   (constants folded)
    scale = (math.pi / 2.0) / ((1.0 + s) * t_max)
    offset = (math.pi / 2.0) * s / (1.0 + s)

    def f(tin):
        c = jnp.cos(tin * scale + offset)
        return alpha_bar_min + span * (c * c)

    # f(0) is t-independent -> compile-time scalar; multiply by 1/f(0) instead
    # of dividing elementwise in the kernel.
    f0 = alpha_bar_min + span * (math.cos(offset) ** 2)
    inv_f0 = 1.0 / f0

    abar_t_ref[...] = (f(t) * inv_f0).astype(abar_t_ref.dtype)
    abar_tm1_ref[...] = (f(t - 1.0) * inv_f0).astype(abar_tm1_ref.dtype)


# --------------------------------- wrapper -----------------------------------
def _round_up(x, m):
    return ((x + m - 1) // m) * m


def make_noise_scheduler(schedule_type="linear", alpha_bar_min=0.0, t_max=100.0, s=0.008):
    """Returns a callable t -> (alpha_bar_t, alpha_bar_tminus1)."""
    if schedule_type == "linear":
        kern = functools.partial(_linear_kernel,
                                 alpha_bar_min=float(alpha_bar_min), t_max=float(t_max))
    elif schedule_type == "cosine":
        kern = functools.partial(_cosine_kernel,
                                 alpha_bar_min=float(alpha_bar_min), t_max=float(t_max),
                                 s=float(s))
    else:
        raise ValueError(
            f"invalid noise scheduler chosen. valid options are ['cosine', 'linear'], "
            f"got {schedule_type!r}")

    def _run(t2):
        """t2: (R, C) f32 slab with R % 8 == 0 and C % 128 == 0."""
        R, C = t2.shape
        block_rows = min(R, max(_SUBLANE, (_MAX_BLOCK_ELEMS // C) // _SUBLANE * _SUBLANE))
        grid = (pl.cdiv(R, block_rows),)
        spec = pl.BlockSpec((block_rows, C), lambda i: (i, 0))
        out_sds = jax.ShapeDtypeStruct((R, C), jnp.float32)
        return pl.pallas_call(
            kern,
            out_shape=(out_sds, out_sds),
            grid=grid,
            in_specs=[spec],
            out_specs=(spec, spec),
            compiler_params=pltpu.CompilerParams(
                dimension_semantics=("parallel",)),  # shards rows across TCs on v7x
        )(t2)

    def scheduler(t):
        t = jnp.asarray(t, jnp.float32)
        orig_shape = t.shape
        n = int(t.size)

        if n == 0:
            empty = jnp.zeros(orig_shape, jnp.float32)
            return empty, empty

        if (t.ndim >= 2
                and t.shape[-1] % _LANE == 0
                and t.shape[-2] % _SUBLANE == 0):
            # Already (8,128)-aligned: collapse leading dims only (row-major,
            # layout-preserving -> no relayout copies around the pallas_call).
            rows = n // t.shape[-1]
            t2 = t.reshape(rows, t.shape[-1])
            abar_t, abar_tm1 = _run(t2)
            return abar_t.reshape(orig_shape), abar_tm1.reshape(orig_shape)

        # Misaligned / small input: pad the flat vector into a dense (R, 128)
        # slab with R % 8 == 0 so vregs are fully occupied and stores unmasked.
        n_pad = _round_up(n, _SUBLANE * _LANE)
        t_flat = jnp.pad(t.reshape(-1), (0, n_pad - n))
        t2 = t_flat.reshape(n_pad // _LANE, _LANE)
        abar_t, abar_tm1 = _run(t2)
        abar_t = abar_t.reshape(-1)[:n].reshape(orig_shape)
        abar_tm1 = abar_tm1.reshape(-1)[:n].reshape(orig_shape)
        return abar_t, abar_tm1

    return scheduler


# ----------------------------- pure-JAX reference -----------------------------
def reference(t, schedule_type="linear", alpha_bar_min=0.0, t_max=100.0, s=0.008):
    t = jnp.asarray(t, jnp.float32)
    if schedule_type == "linear":
        abar_t = alpha_bar_min + (1.0 - t / t_max) * (1.0 - alpha_bar_min)
        abar_tm1 = alpha_bar_min + (1.0 - (t - 1.0) / t_max) * (1.0 - alpha_bar_min)
        return abar_t, abar_tm1
    f = lambda tin: (alpha_bar_min
                     + (1.0 - alpha_bar_min)
                     * jnp.cos(jnp.pi / 2.0 * (tin / t_max + s) / (1.0 + s)) ** 2)
    f_t, f_tm1, f_0 = f(t), f(t - 1.0), f(jnp.zeros_like(t))
    return f_t / f_0, f_tm1 / f_0


# ------------------------------------ main ------------------------------------
if __name__ == "__main__":
    root = jax.random.PRNGKey(0)
    k_a, k_b = jax.random.split(root)

    test_inputs = [
        # (8,128)-aligned batch: pass-through path (no relayout, full vregs).
        jax.random.uniform(k_a, (8, 128), jnp.float32, minval=0.0, maxval=100.0),
        # Ragged 1-D batch of timesteps: padded (R, 128) path.
        jax.random.uniform(k_b, (37,), jnp.float32, minval=0.0, maxval=100.0),
        # Scalar timestep.
        jnp.asarray(42.0, jnp.float32),
    ]

    ok = True
    for sched_type in ("linear", "cosine"):
        sched = make_noise_scheduler(schedule_type=sched_type,
                                     alpha_bar_min=0.0, t_max=100.0)
        for t in test_inputs:
            abar_t, abar_tm1 = sched(t)
            abar_t = jax.block_until_ready(abar_t)
            abar_tm1 = jax.block_until_ready(abar_tm1)

            ref_t, ref_tm1 = reference(t, schedule_type=sched_type,
                                       alpha_bar_min=0.0, t_max=100.0)

            ok &= abar_t.shape == t.shape and abar_tm1.shape == t.shape
            ok &= bool(jnp.all(jnp.isfinite(abar_t))) and bool(jnp.all(jnp.isfinite(abar_tm1)))
            ok &= bool(jnp.allclose(abar_t, ref_t, rtol=1e-5, atol=1e-5))
            ok &= bool(jnp.allclose(abar_tm1, ref_tm1, rtol=1e-5, atol=1e-5))

    assert ok, "mismatch vs reference"
    print("KERNEL_OK")
</pallas_src>

<mosaic_0001>
module attributes {stable_mosaic.version = 11 : i64} {
  func.func @_linear_kernel(%arg0: i32, %arg1: memref<8x128xf32, #tpu.memory_space<vmem>>, %arg2: memref<8x128xf32, #tpu.memory_space<vmem>>, %arg3: memref<8x128xf32, #tpu.memory_space<vmem>>) attributes {dimension_semantics = [#tpu.dimension_semantics<parallel>], iteration_bounds = array<i64: 1>, scalar_prefetch = 0 : i64, scratch_operands = 0 : i64, tpu.core_type = #tpu.core_type<tc>, window_params = [{transform_indices = @transform_0, window_bounds = array<i64: 8, 128>}, {transform_indices = @transform_1, window_bounds = array<i64: 8, 128>}, {transform_indices = @transform_2, window_bounds = array<i64: 8, 128>}]} {
    %c0 = arith.constant 0 : index
    %c0_0 = arith.constant 0 : index
    %0 = vector.load %arg1[%c0, %c0_0] : memref<8x128xf32, #tpu.memory_space<vmem>>, vector<8x128xf32>
    %cst = arith.constant 0.00999999977 : f32
    %1 = vector.broadcast %cst : f32 to vector<8x128xf32>
    %2 = arith.mulf %0, %1 : vector<8x128xf32>
    %cst_1 = arith.constant 1.000000e+00 : f32
    %3 = vector.broadcast %cst_1 : f32 to vector<8x128xf32>
    %4 = arith.subf %3, %2 : vector<8x128xf32>
    %cst_2 = arith.constant 1.000000e+00 : f32
    %5 = vector.broadcast %cst_2 : f32 to vector<8x128xf32>
    %6 = arith.mulf %4, %5 : vector<8x128xf32>
    %cst_3 = arith.constant 0.000000e+00 : f32
    %7 = vector.broadcast %cst_3 : f32 to vector<8x128xf32>
    %8 = arith.addf %7, %6 : vector<8x128xf32>
    %c0_4 = arith.constant 0 : index
    %c0_5 = arith.constant 0 : index
    %9 = vector.load %arg2[%c0_4, %c0_5] : memref<8x128xf32, #tpu.memory_space<vmem>>, vector<8x128xf32>
    tpu.vector_store %arg2[%c0_4, %c0_5], %8 {strides = array<i32>} : memref<8x128xf32, #tpu.memory_space<vmem>>, vector<8x128xf32>,
    %cst_6 = arith.constant 0.00999999977 : f32
    %10 = vector.broadcast %cst_6 : f32 to vector<8x128xf32>
    %11 = arith.addf %8, %10 : vector<8x128xf32>
    %c0_7 = arith.constant 0 : index
    %c0_8 = arith.constant 0 : index
    %12 = vector.load %arg3[%c0_7, %c0_8] : memref<8x128xf32, #tpu.memory_space<vmem>>, vector<8x128xf32>
    tpu.vector_store %arg3[%c0_7, %c0_8], %11 {strides = array<i32>} : memref<8x128xf32, #tpu.memory_space<vmem>>, vector<8x128xf32>,
    return
  }
  func.func @transform_0(%arg0: i32) -> (i32, i32) {
    %c0_i32 = arith.constant 0 : i32
    %c0_i32_0 = arith.constant 0 : i32
    return %arg0, %c0_i32 : i32, i32
  }
  func.func @transform_1(%arg0: i32) -> (i32, i32) {
    %c0_i32 = arith.constant 0 : i32
    %c0_i32_0 = arith.constant 0 : i32
    return %arg0, %c0_i32 : i32, i32
  }
  func.func @transform_2(%arg0: i32) -> (i32, i32) {
    %c0_i32 = arith.constant 0 : i32
    %c0_i32_0 = arith.constant 0 : i32
    return %arg0, %c0_i32 : i32, i32
  }
}

</mosaic_0001>

<llo_original>
// kernel: tpu_custom_call.1
$region0: #{tpu_custom_call.1}
  #allocation0 [shape = 'u32[]', space=smem, size = 0x4, offset = 0x4, fixed_abs, tag = 'smem constant byte address 0x4 - core index']
  #allocation1 [shape = 'u32[144,128]{1,0:T(1,128)}', space=vmem, size = 0x12000, scoped, tag = 'internal scratch']
  %s0 = inlined_call_operand.hbm [shape: f32[8,128], index: 0, kind: input, shape index: {}]
  %s1 = inlined_call_operand.hbm [shape: f32[8,128], index: 1, kind: output, shape index: {0}]
  %s2 = inlined_call_operand.hbm [shape: f32[8,128], index: 2, kind: output, shape index: {1}]
  %3 = xla_tuple %s1, %s2
  %s4 = sld [smem:[#allocation0]]
  $region26: #{tpu_custom_call.1} parent=0
    _
  %s6 = ssub.s32 1, %s4
  %s7 = scalar_select 0, %s6, %s4
  $region1: #{tpu_custom_call.1} parent=0
    #allocation2 [shape = 'u8[4096]{0}', space=vmem, size = 0x1000, scoped, tag = 'input window, operand 0, single buffered']
    #allocation3 [shape = 's32[1]{0}', space=sflag, size = 0x4, scoped, tag = 'scoped memory for tpu_custom_call.1']
    #allocation4 [shape = 's32[1]{0}', space=sflag, size = 0x4, scoped, tag = 'scoped memory for tpu_custom_call.1']
    #allocation5 [shape = 'u8[4096]{0}', space=vmem, size = 0x1000, scoped, tag = 'output window, operand 0, single buffered']
    #allocation6 [shape = 'u8[4096]{0}', space=vmem, size = 0x1000, scoped, tag = 'output window, operand 1, single buffered']
    #allocation7 [shape = 's32[1]{0}', space=sflag, size = 0x4, scoped, tag = 'scoped memory for tpu_custom_call.1']
    %8 = vsyncpa [#allocation3], 0
    %9 = vsyncpa [#allocation4], 0
    %10 = vsyncpa [#allocation7], 0
    // Predicated region
    $region2: #{tpu_custom_call.1} parent=1 // pred_check
      _
    $region3: #{tpu_custom_call.1} parent=1 // pred_check_branch
      %12 = sbr.rel (0) target = $region5
    $region4: #{tpu_custom_call.1} parent=1 // pred_region
      %s14 = ssub.s32 128, 128
      %15 = vsyncadd [#allocation3], %s14
      %s17 = sshll.u32 [#allocation2], 4
      %s18 = int_to_ptr.vmem [resolvable:$true] %s17
      %20 = dma.hbm_to_vmem [thread:$0]  %s0, 128, %s18, [#allocation3]
    $region5: #{tpu_custom_call.1} parent=1 // pred_fallthru
      _
    // Predicated region
    $region6: #{tpu_custom_call.1} parent=1 // pred_check
      _
    $region7: #{tpu_custom_call.1} parent=1 // pred_check_branch
      %22 = sbr.rel (0) target = $region9
    $region8: #{tpu_custom_call.1} parent=1 // pred_region
      %23 = dma.done [#allocation3], 128
    $region9: #{tpu_custom_call.1} parent=1 // pred_fallthru
      _
    %v24 = vld [vmem:[#allocation2] sm:$0xff]
    %v25 = vmul.f32 %v24, 0.01
    %v26 = vsub.f32 1.0, %v25
    %v27 = vadd.f32 %v26, 0.0
    %28 = vst [vmem:[#allocation5] sm:$0xff] %v27
    %v29 = vadd.f32 %v27, 0.01
    %30 = vst [vmem:[#allocation6] sm:$0xff] %v29
    // Predicated region
    $region10: #{tpu_custom_call.1} parent=1 // pred_check
      _
    $region11: #{tpu_custom_call.1} parent=1 // pred_check_branch
      %32 = sbr.rel (0) target = $region13
    $region12: #{tpu_custom_call.1} parent=1 // pred_region
      %s34 = ssub.s32 128, 128
      %35 = vsyncadd [#allocation4], %s34
      %s37 = sshll.u32 [#allocation5], 4
      %s38 = int_to_ptr.vmem [resolvable:$true] %s37
      %40 = dma.vmem_to_hbm [thread:$0]  %s38, 128, %s1, [#allocation4]
    $region13: #{tpu_custom_call.1} parent=1 // pred_fallthru
      _
    // Predicated region
    $region14: #{tpu_custom_call.1} parent=1 // pred_check
      _
    $region15: #{tpu_custom_call.1} parent=1 // pred_check_branch
      %42 = sbr.rel (0) target = $region17
    $region16: #{tpu_custom_call.1} parent=1 // pred_region
      %s44 = ssub.s32 128, 128
      %45 = vsyncadd [#allocation7], %s44
      %s47 = sshll.u32 [#allocation6], 4
      %s48 = int_to_ptr.vmem [resolvable:$true] %s47
      %50 = dma.vmem_to_hbm [thread:$0]  %s48, 128, %s2, [#allocation7]
    $region17: #{tpu_custom_call.1} parent=1 // pred_fallthru
      _
    // Predicated region
    $region18: #{tpu_custom_call.1} parent=1 // pred_check
      _
    $region19: #{tpu_custom_call.1} parent=1 // pred_check_branch
      %52 = sbr.rel (0) target = $region21
    $region20: #{tpu_custom_call.1} parent=1 // pred_region
      %53 = dma.done [#allocation4], 128
    $region21: #{tpu_custom_call.1} parent=1 // pred_fallthru
      _
    // Predicated region
    $region22: #{tpu_custom_call.1} parent=1 // pred_check
      _
    $region23: #{tpu_custom_call.1} parent=1 // pred_check_branch
      %55 = sbr.rel (0) target = $region25
    $region24: #{tpu_custom_call.1} parent=1 // pred_region
      %56 = dma.done [#allocation7], 128
    $region25: #{tpu_custom_call.1} parent=1 // pred_fallthru
      _
    %57 = vsyncpa [#allocation3], 1
    %58 = vsyncpa [#allocation4], 1
    %59 = vsyncpa [#allocation7], 1

</llo_original>
